<compile_context>
chip_gen: v7x
topology: tpu7x:2x2x1
jax: 0.10.0
libtpu: 0.0.40
codegen_flags: <defaults>
</compile_context>

<pallas_src>
import jax
import jax.numpy as jnp
from jax.experimental import pallas as pl
from jax.experimental.pallas import tpu as pltpu


def _round_up(x, n):
    return ((x + n - 1) // n) * n


def _effective_tf(ffn, tf):
    """FFN tile size: the full ffn if it fits, else a lane-aligned (x128) tile."""
    if ffn <= tf:
        return ffn
    return max(128, (tf // 128) * 128)


def mlp_kernel(x_ref, wg_ref, wu_ref, wd_ref, o_ref, acc_ref):
    # x_ref : (tm, H)    token tile (stays resident across the F reduction)
    # wg_ref: (H, tf)    gate-projection weight tile
    # wu_ref: (H, tf)    up-projection weight tile
    # wd_ref: (tf, H)    down-projection weight tile
    # o_ref : (tm, H)    output tile (revisited across F)
    # acc_ref: (tm, H)   f32 accumulator scratch
    f = pl.program_id(1)

    @pl.when(f == 0)
    def _init():
        acc_ref[...] = jnp.zeros_like(acc_ref)

    x = x_ref[...]
    gate = jnp.dot(x, wg_ref[...], preferred_element_type=jnp.float32)
    up = jnp.dot(x, wu_ref[...], preferred_element_type=jnp.float32)
    # swiglu in f32: silu(gate) * up   (VPU/EUP work, hidden under the MXU)
    act = (gate * jax.nn.sigmoid(gate)) * up
    acc_ref[...] += jnp.dot(act.astype(wd_ref.dtype), wd_ref[...],
                            preferred_element_type=jnp.float32)

    @pl.when(f == pl.num_programs(1) - 1)
    def _finalize():
        o_ref[...] = acc_ref[...].astype(o_ref.dtype)


def prepare_weights(w_h_to_4h, w_4h_to_h, *, tf=512, dtype=None):
    """One-time (outside the hot path) weight prep.

    Splits the fused h->4h weight into gate/up halves, zero-pads the FFN axis
    up to a multiple of the FFN tile (zero columns/rows contribute exactly 0),
    and optionally casts to a compute dtype (e.g. bf16).
    """
    hidden, two_ffn = w_h_to_4h.shape
    ffn = two_ffn // 2
    w_gate = w_h_to_4h[:, :ffn]
    w_up = w_h_to_4h[:, ffn:]
    w_down = w_4h_to_h

    tf_eff = _effective_tf(ffn, tf)
    pad = (-ffn) % tf_eff
    if pad:
        w_gate = jnp.pad(w_gate, ((0, 0), (0, pad)))
        w_up = jnp.pad(w_up, ((0, 0), (0, pad)))
        w_down = jnp.pad(w_down, ((0, pad), (0, 0)))
    if dtype is not None:
        w_gate = w_gate.astype(dtype)
        w_up = w_up.astype(dtype)
        w_down = w_down.astype(dtype)
    return w_gate, w_up, w_down


def glm_mlp(hidden_states, w_gate, w_up, w_down, *, tm=256, tf=512):
    """hidden_states: (seq, batch, hidden)   (ChatGLM [s, b, h] convention)
       w_gate, w_up : (hidden, ffn_padded)   from prepare_weights()
       w_down       : (ffn_padded, hidden)

    Tile defaults target v6e/v7x in bf16 (tm=256, tf=512 fits the 64 MiB v7x
    VMEM with headroom); on v5e use tm=128, larger tf (e.g. 1024) is fine on
    v5e/v6e with their 128 MiB VMEM.
    """
    seq, batch, hidden = hidden_states.shape
    ffn_p = w_gate.shape[1]
    assert w_up.shape == (hidden, ffn_p)
    assert w_down.shape == (ffn_p, hidden)

    x2d = hidden_states.reshape(seq * batch, hidden)
    m = x2d.shape[0]

    tm = max(8, min(tm, _round_up(m, 8)))
    tf = _effective_tf(ffn_p, tf)
    if ffn_p % tf != 0:
        raise ValueError(
            "FFN dim %d not a multiple of tile %d; run prepare_weights(..., tf=%d)"
            % (ffn_p, tf, tf))

    grid_m = pl.cdiv(m, tm)
    grid_f = ffn_p // tf

    # VMEM budget (double-buffered inputs/outputs + f32 accumulator), with headroom.
    in_bytes = (tm * hidden * x2d.dtype.itemsize
                + 2 * hidden * tf * w_gate.dtype.itemsize
                + tf * hidden * w_down.dtype.itemsize)
    out_bytes = tm * hidden * hidden_states.dtype.itemsize
    vmem_need = 2 * (in_bytes + out_bytes) + tm * hidden * 4
    vmem_limit = int(min(100 * 2**20, max(32 * 2**20, int(vmem_need * 1.3))))

    cost = pl.CostEstimate(
        flops=6 * m * hidden * ffn_p,
        transcendentals=m * ffn_p,
        bytes_accessed=(m * hidden * (x2d.dtype.itemsize + hidden_states.dtype.itemsize)
                        + grid_m * 3 * hidden * ffn_p * w_gate.dtype.itemsize),
    )

    out2d = pl.pallas_call(
        mlp_kernel,
        out_shape=jax.ShapeDtypeStruct((m, hidden), hidden_states.dtype),
        grid_spec=pltpu.PrefetchScalarGridSpec(
            num_scalar_prefetch=0,
            grid=(grid_m, grid_f),                       # F (reduction) innermost
            in_specs=[
                pl.BlockSpec((tm, hidden), lambda i, f: (i, 0)),
                pl.BlockSpec((hidden, tf), lambda i, f: (0, f)),
                pl.BlockSpec((hidden, tf), lambda i, f: (0, f)),
                pl.BlockSpec((tf, hidden), lambda i, f: (f, 0)),
            ],
            out_specs=pl.BlockSpec((tm, hidden), lambda i, f: (i, 0)),
            scratch_shapes=[pltpu.VMEM((tm, hidden), jnp.float32)],
        ),
        compiler_params=pltpu.CompilerParams(
            dimension_semantics=("parallel", "arbitrary"),
            vmem_limit_bytes=vmem_limit),
        cost_estimate=cost,
    )(x2d, w_gate, w_up, w_down)

    return out2d.reshape(seq, batch, hidden)


def reference_mlp(hidden_states, w_h_to_4h, w_4h_to_h):
    inter = jnp.einsum("sbh,hf->sbf", hidden_states, w_h_to_4h)
    x0, x1 = jnp.split(inter, 2, axis=-1)
    act = jax.nn.silu(x0) * x1
    return jnp.einsum("sbf,fh->sbh", act, w_4h_to_h)


if __name__ == "__main__":
    # Small, MLP-consistent shapes: seq=8, batch=2, hidden=32, ffn=256.
    seq, batch, hidden, ffn = 8, 2, 32, 256

    key = jax.random.PRNGKey(0)
    k_x, k_w1, k_w2 = jax.random.split(key, 3)

    hidden_states = jax.random.normal(k_x, (seq, batch, hidden), jnp.float32)
    # Torch Linear weights are (out, in); stored transposed here as (in, out).
    w_h_to_4h = jax.random.normal(k_w1, (hidden, 2 * ffn), jnp.float32) * 0.05
    w_4h_to_h = jax.random.normal(k_w2, (ffn, hidden), jnp.float32) * 0.05

    ref = reference_mlp(hidden_states, w_h_to_4h, w_4h_to_h)

    # 1) f32, FFN tiled into 2 reduction steps (exercises the accumulator path).
    wg, wu, wd = prepare_weights(w_h_to_4h, w_4h_to_h, tf=128)
    out = jax.block_until_ready(glm_mlp(hidden_states, wg, wu, wd, tm=256, tf=128))
    assert out.shape == (seq, batch, hidden)
    assert jnp.allclose(out, ref, atol=1e-5, rtol=1e-5), "f32 tiled mismatch"

    # 2) uneven token count (7*1 = 7 tokens, partial last token tile), single F step.
    x_odd = hidden_states[:7, :1]
    wg1, wu1, wd1 = prepare_weights(w_h_to_4h, w_4h_to_h, tf=512)
    out_odd = jax.block_until_ready(glm_mlp(x_odd, wg1, wu1, wd1, tm=256, tf=512))
    assert jnp.allclose(out_odd, ref[:7, :1], atol=1e-5, rtol=1e-5), "partial-tile mismatch"

    # 3) bf16 weights + activations (f32 MXU accumulation in-kernel).
    wg16, wu16, wd16 = prepare_weights(w_h_to_4h, w_4h_to_h, tf=128, dtype=jnp.bfloat16)
    out_bf16 = jax.block_until_ready(
        glm_mlp(hidden_states.astype(jnp.bfloat16), wg16, wu16, wd16, tm=256, tf=128))
    ref_bf16 = reference_mlp(
        hidden_states.astype(jnp.bfloat16).astype(jnp.float32),
        w_h_to_4h.astype(jnp.bfloat16).astype(jnp.float32),
        w_4h_to_h.astype(jnp.bfloat16).astype(jnp.float32))
    assert jnp.allclose(out_bf16.astype(jnp.float32), ref_bf16,
                        atol=5e-2, rtol=5e-2), "bf16 mismatch"

    print("KERNEL_OK")
</pallas_src>

<mosaic_0001>
module attributes {stable_mosaic.version = 11 : i64} {
  func.func @mlp_kernel(%arg0: i32, %arg1: i32, %arg2: memref<16x32xf32, #tpu.memory_space<vmem>>, %arg3: memref<32x128xf32, #tpu.memory_space<vmem>>, %arg4: memref<32x128xf32, #tpu.memory_space<vmem>>, %arg5: memref<128x32xf32, #tpu.memory_space<vmem>>, %arg6: memref<16x32xf32, #tpu.memory_space<vmem>>, %arg7: memref<16x32xf32, #tpu.memory_space<vmem>>) attributes {dimension_semantics = [#tpu.dimension_semantics<parallel>, #tpu.dimension_semantics<arbitrary>], iteration_bounds = array<i64: 1, 2>, scalar_prefetch = 0 : i64, scratch_operands = 1 : i64, tpu.core_type = #tpu.core_type<tc>, window_params = [{transform_indices = @transform_0, window_bounds = array<i64: 16, 32>}, {transform_indices = @transform_1, window_bounds = array<i64: 32, 128>}, {transform_indices = @transform_2, window_bounds = array<i64: 32, 128>}, {transform_indices = @transform_3, window_bounds = array<i64: 128, 32>}, {transform_indices = @transform_4, window_bounds = array<i64: 16, 32>}]} {
    %c0_i32 = arith.constant 0 : i32
    %0 = arith.cmpi eq, %arg1, %c0_i32 : i32
    %1 = arith.extui %0 : i1 to i32
    %c0_i32_0 = arith.constant 0 : i32
    %2 = arith.cmpi ne, %1, %c0_i32_0 : i32
    scf.if %2 {
      %cst_16 = arith.constant 0.000000e+00 : f32
      %23 = vector.broadcast %cst_16 : f32 to vector<16x32xf32>
      %c0_17 = arith.constant 0 : index
      %c0_18 = arith.constant 0 : index
      %24 = vector.load %arg7[%c0_17, %c0_18] : memref<16x32xf32, #tpu.memory_space<vmem>>, vector<16x32xf32>
      tpu.vector_store %arg7[%c0_17, %c0_18], %23 {strides = array<i32>} : memref<16x32xf32, #tpu.memory_space<vmem>>, vector<16x32xf32>,
    } else {
    }
    %c0 = arith.constant 0 : index
    %c0_1 = arith.constant 0 : index
    %3 = vector.load %arg2[%c0, %c0_1] : memref<16x32xf32, #tpu.memory_space<vmem>>, vector<16x32xf32>
    %c0_2 = arith.constant 0 : index
    %c0_3 = arith.constant 0 : index
    %4 = vector.load %arg3[%c0_2, %c0_3] : memref<32x128xf32, #tpu.memory_space<vmem>>, vector<32x128xf32>
    %cst = arith.constant dense<0.000000e+00> : vector<16x128xf32>
    %5 = tpu.matmul %3, %4, %cst {dimension_numbers = #tpu.dot_dimension_numbers<[1], [0], [0], [1], [0, 0, 1, 1], [], []>} : vector<16x32xf32>, vector<32x128xf32>, vector<16x128xf32> -> vector<16x128xf32>
    %c0_4 = arith.constant 0 : index
    %c0_5 = arith.constant 0 : index
    %6 = vector.load %arg4[%c0_4, %c0_5] : memref<32x128xf32, #tpu.memory_space<vmem>>, vector<32x128xf32>
    %cst_6 = arith.constant dense<0.000000e+00> : vector<16x128xf32>
    %7 = tpu.matmul %3, %6, %cst_6 {dimension_numbers = #tpu.dot_dimension_numbers<[1], [0], [0], [1], [0, 0, 1, 1], [], []>} : vector<16x32xf32>, vector<32x128xf32>, vector<16x128xf32> -> vector<16x128xf32>
    %8 = arith.negf %5 : vector<16x128xf32>
    %9 = math.exp %8 : vector<16x128xf32>
    %cst_7 = arith.constant 1.000000e+00 : f32
    %10 = vector.broadcast %cst_7 : f32 to vector<16x128xf32>
    %11 = arith.addf %10, %9 : vector<16x128xf32>
    %12 = arith.divf %10, %11 : vector<16x128xf32>
    %13 = arith.mulf %5, %12 : vector<16x128xf32>
    %14 = arith.mulf %13, %7 : vector<16x128xf32>
    %c0_8 = arith.constant 0 : index
    %c0_9 = arith.constant 0 : index
    %15 = vector.load %arg7[%c0_8, %c0_9] : memref<16x32xf32, #tpu.memory_space<vmem>>, vector<16x32xf32>
    %c0_10 = arith.constant 0 : index
    %c0_11 = arith.constant 0 : index
    %16 = vector.load %arg5[%c0_10, %c0_11] : memref<128x32xf32, #tpu.memory_space<vmem>>, vector<128x32xf32>
    %cst_12 = arith.constant dense<0.000000e+00> : vector<16x32xf32>
    %17 = tpu.matmul %14, %16, %cst_12 {dimension_numbers = #tpu.dot_dimension_numbers<[1], [0], [0], [1], [0, 0, 1, 1], [], []>} : vector<16x128xf32>, vector<128x32xf32>, vector<16x32xf32> -> vector<16x32xf32>
    %18 = arith.addf %15, %17 : vector<16x32xf32>
    %c0_13 = arith.constant 0 : index
    %c0_14 = arith.constant 0 : index
    %19 = vector.load %arg7[%c0_13, %c0_14] : memref<16x32xf32, #tpu.memory_space<vmem>>, vector<16x32xf32>
    tpu.vector_store %arg7[%c0_13, %c0_14], %18 {strides = array<i32>} : memref<16x32xf32, #tpu.memory_space<vmem>>, vector<16x32xf32>,
    %c1_i32 = arith.constant 1 : i32
    %20 = arith.cmpi eq, %arg1, %c1_i32 : i32
    %21 = arith.extui %20 : i1 to i32
    %c0_i32_15 = arith.constant 0 : i32
    %22 = arith.cmpi ne, %21, %c0_i32_15 : i32
    scf.if %22 {
      %c0_16 = arith.constant 0 : index
      %c0_17 = arith.constant 0 : index
      %23 = vector.load %arg7[%c0_16, %c0_17] : memref<16x32xf32, #tpu.memory_space<vmem>>, vector<16x32xf32>
      %c0_18 = arith.constant 0 : index
      %c0_19 = arith.constant 0 : index
      %24 = vector.load %arg6[%c0_18, %c0_19] : memref<16x32xf32, #tpu.memory_space<vmem>>, vector<16x32xf32>
      tpu.vector_store %arg6[%c0_18, %c0_19], %23 {strides = array<i32>} : memref<16x32xf32, #tpu.memory_space<vmem>>, vector<16x32xf32>,
    } else {
    }
    return
  }
  func.func @transform_0(%arg0: i32, %arg1: i32) -> (i32, i32) {
    %c0_i32 = arith.constant 0 : i32
    %c0_i32_0 = arith.constant 0 : i32
    return %arg0, %c0_i32 : i32, i32
  }
  func.func @transform_1(%arg0: i32, %arg1: i32) -> (i32, i32) {
    %c0_i32 = arith.constant 0 : i32
    %c0_i32_0 = arith.constant 0 : i32
    return %c0_i32, %arg1 : i32, i32
  }
  func.func @transform_2(%arg0: i32, %arg1: i32) -> (i32, i32) {
    %c0_i32 = arith.constant 0 : i32
    %c0_i32_0 = arith.constant 0 : i32
    return %c0_i32, %arg1 : i32, i32
  }
  func.func @transform_3(%arg0: i32, %arg1: i32) -> (i32, i32) {
    %c0_i32 = arith.constant 0 : i32
    %c0_i32_0 = arith.constant 0 : i32
    return %arg1, %c0_i32 : i32, i32
  }
  func.func @transform_4(%arg0: i32, %arg1: i32) -> (i32, i32) {
    %c0_i32 = arith.constant 0 : i32
    %c0_i32_0 = arith.constant 0 : i32
    return %arg0, %c0_i32 : i32, i32
  }
}

</mosaic_0001>

<llo_original>
// kernel: tpu_custom_call.1
$region0: #{tpu_custom_call.1}
  #allocation0 [shape = 'u32[]', space=smem, size = 0x4, offset = 0x4, fixed_abs, tag = 'smem constant byte address 0x4 - core index']
  #allocation1 [shape = 'u32[144,128]{1,0:T(1,128)}', space=vmem, size = 0x12000, scoped, tag = 'internal scratch']
  #allocation2 [shape = 'f32[16,32]{1,0:T(8,128)}', space=vmem, size = 0x2000, scoped, tag = 'scratch operand']
  %s0 = inlined_call_operand.vmem [shape: f32[16,32], index: 0, kind: input, shape index: {}]
  %s1 = inlined_call_operand.vmem [shape: f32[32,256], index: 1, kind: input, shape index: {}]
  %s2 = inlined_call_operand.vmem [shape: f32[32,256], index: 2, kind: input, shape index: {}]
  %s3 = inlined_call_operand.vmem [shape: f32[256,32], index: 3, kind: input, shape index: {}]
  %s4 = inlined_call_operand.hbm [shape: f32[16,32], index: 4, kind: output, shape index: {}]
  %s5 = sld [smem:[#allocation0]]
  $region133: #{tpu_custom_call.1} parent=0
    _
  %s7 = ssub.s32 1, %s5
  %s8 = scalar_select 0, %s7, %s5
  $region1: #{tpu_custom_call.1} parent=0
    #allocation3 [shape = 'u8[32768]{0}', space=vmem, size = 0x8000, scoped, tag = 'input window, operand 1']
    #allocation4 [shape = 'u8[32768]{0}', space=vmem, size = 0x8000, scoped, tag = 'input window, operand 2']
    #allocation5 [shape = 'u8[8192]{0}', space=vmem, size = 0x2000, scoped, tag = 'output window, operand 0, single buffered']
    #allocation6 [shape = 's32[2]{0}', space=sflag, size = 0x8, scoped, tag = 'scoped memory for tpu_custom_call.1']
    %9 = vsyncpa [#allocation6], 0
    loop: start=0, step=1, limit=4
    $region2: #{tpu_custom_call.1} parent=1 // loop_pre_header
      _
    $region3: #{tpu_custom_call.1} parent=1 // loop_header
      %s11 = sphi 0, %s15
      %p12 = scmp.ge.s32.totalorder %s11, 4
      %s18 = sphi 0, %s30
      %s19 = sphi 0, %s26
      %s20 = sphi 0, %s18
      %s21 = sphi 0, %s19
      %s22 = sphi 0, %s20
      %s23 = sphi 0, %s21
      %s33 = sphi 0, %s35
      %s36 = sphi 0, %s33
      %s37 = sphi 0, %s36
      %s53 = sphi 0, %s37
      %s59 = sphi 0, %s61
      %s62 = sphi 0, %s59
      %s63 = sphi 0, %s62
      %s79 = sphi 0, %s63
      %s85 = sphi 0, %s87
      %s88 = sphi 0, %s85
      %s89 = sphi 0, %s88
      %s105 = sphi 0, %s89
      %s111 = sphi 0, %s113
      %s114 = sphi 0, %s111
      %s115 = sphi 0, %s114
      %s131 = sphi 0, %s115
      %s137 = sphi 0, %s139
      %s140 = sphi 0, %s137
      %s141 = sphi 0, %s140
      %s157 = sphi 0, %s141
    $region4: #{tpu_custom_call.1} parent=1 // loop_header_branch
      %14 = sbr.rel (%p12) target = $region8
    $region5: #{tpu_custom_call.1} parent=1 // loop_body
      %s16 = ssub.s32 %s11, 1
      %s17 = ssub.s32 %s11, 2
      %s24 = sadd.s32 1, %s19
      %p25 = scmp.ge.s32.totalorder %s24, 2
      %s26 = scalar_select %p25, 0, %s24
      %s27 = sadd.s32 1, %s18
      %s28 = scalar_select %p25, %s27, %s18
      %p29 = scmp.ge.s32.totalorder %s28, 1
      %s30 = scalar_select %p29, 0, %s28
      %s31 = ssub.s32 %s18, %s30
      %p32 = scmp.eq.s32.totalorder %s31, 0
      %s34 = sadd.s32 %s33, 1
      %s35 = scalar_select %p32, %s33, %s34
      %p38 = pneg %p32
      %p39 = scmp.eq.s32.totalorder %s11, 1
      %p40 = por %p38, %p39
      %p41 = scmp.ne.s32.totalorder %s33, %s36
      %p42 = scmp.eq.s32.totalorder %s11, 0
      %p43 = por %p41, %p42
      %p44 = scmp.ne.s32.totalorder %s33, %s36
      %p45 = scmp.eq.s32.totalorder %s16, 1
      %p46 = por %p44, %p45
      %p47 = scmp.ne.s32.totalorder %s36, %s37
      %p48 = scmp.eq.s32.totalorder %s16, 0
      %p49 = por %p47, %p48
      %p50 = scmp.ne.s32.totalorder %s36, %s37
      %p51 = scmp.eq.s32.totalorder %s17, 1
      %p52 = por %p50, %p51
      %p54 = scmp.ne.s32.totalorder %s37, %s53
      %p55 = scmp.eq.s32.totalorder %s17, 0
      %p56 = por %p54, %p55
      %s57 = ssub.s32 %s19, %s26
      %p58 = scmp.eq.s32.totalorder %s57, 0
      %s60 = sadd.s32 %s59, 1
      %s61 = scalar_select %p58, %s59, %s60
      %p64 = pneg %p58
      %p65 = scmp.eq.s32.totalorder %s11, 1
      %p66 = por %p64, %p65
      %p67 = scmp.ne.s32.totalorder %s59, %s62
      %p68 = scmp.eq.s32.totalorder %s11, 0
      %p69 = por %p67, %p68
      %p70 = scmp.ne.s32.totalorder %s59, %s62
      %p71 = scmp.eq.s32.totalorder %s16, 1
      %p72 = por %p70, %p71
      %p73 = scmp.ne.s32.totalorder %s62, %s63
      %p74 = scmp.eq.s32.totalorder %s16, 0
      %p75 = por %p73, %p74
      %p76 = scmp.ne.s32.totalorder %s62, %s63
      %p77 = scmp.eq.s32.totalorder %s17, 1
      %p78 = por %p76, %p77
      %p80 = scmp.ne.s32.totalorder %s63, %s79
      %p81 = scmp.eq.s32.totalorder %s17, 0
      %p82 = por %p80, %p81
      %s83 = ssub.s32 %s19, %s26
      %p84 = scmp.eq.s32.totalorder %s83, 0
      %s86 = sadd.s32 %s85, 1
      %s87 = scalar_select %p84, %s85, %s86
      %p90 = pneg %p84
      %p91 = scmp.eq.s32.totalorder %s11, 1
      %p92 = por %p90, %p91
      %p93 = scmp.ne.s32.totalorder %s85, %s88
      %p94 = scmp.eq.s32.totalorder %s11, 0
      %p95 = por %p93, %p94
      %p96 = scmp.ne.s32.totalorder %s85, %s88
      %p97 = scmp.eq.s32.totalorder %s16, 1
      %p98 = por %p96, %p97
      %p99 = scmp.ne.s32.totalorder %s88, %s89
      %p100 = scmp.eq.s32.totalorder %s16, 0
      %p101 = por %p99, %p100
      %p102 = scmp.ne.s32.totalorder %s88, %s89
      %p103 = scmp.eq.s32.totalorder %s17, 1
      %p104 = por %p102, %p103
      %p106 = scmp.ne.s32.totalorder %s89, %s105
      %p107 = scmp.eq.s32.totalorder %s17, 0
      %p108 = por %p106, %p107
      %s109 = ssub.s32 %s19, %s26
      %p110 = scmp.eq.s32.totalorder %s109, 0
      %s112 = sadd.s32 %s111, 1
      %s113 = scalar_select %p110, %s111, %s112
      %p116 = pneg %p110
      %p117 = scmp.eq.s32.totalorder %s11, 1
      %p118 = por %p116, %p117
      %p119 = scmp.ne.s32.totalorder %s111, %s114
      %p120 = scmp.eq.s32.totalorder %s11, 0
      %p121 = por %p119, %p120
      %p122 = scmp.ne.s32.totalorder %s111, %s114
      %p123 = scmp.eq.s32.totalorder %s16, 1
      %p124 = por %p122, %p123
      %p125 = scmp.ne.s32.totalorder %s114, %s115
      %p126 = scmp.eq.s32.totalorder %s16, 0
      %p127 = por %p125, %p126
      %p128 = scmp.ne.s32.totalorder %s114, %s115
      %p129 = scmp.eq.s32.totalorder %s17, 1
      %p130 = por %p128, %p129
      %p132 = scmp.ne.s32.totalorder %s115, %s131
      %p133 = scmp.eq.s32.totalorder %s17, 0
      %p134 = por %p132, %p133
      %s135 = ssub.s32 %s18, %s30
      %p136 = scmp.eq.s32.totalorder %s135, 0
      %s138 = sadd.s32 %s137, 1
      %s139 = scalar_select %p136, %s137, %s138
      %p142 = pneg %p136
      %p143 = scmp.eq.s32.totalorder %s11, 1
      %p144 = por %p142, %p143
      %p145 = scmp.ne.s32.totalorder %s137, %s140
      %p146 = scmp.eq.s32.totalorder %s11, 0
      %p147 = por %p145, %p146
      %p148 = scmp.ne.s32.totalorder %s137, %s140
      %p149 = scmp.eq.s32.totalorder %s16, 1
      %p150 = por %p148, %p149
      %p151 = scmp.ne.s32.totalorder %s140, %s141
      %p152 = scmp.eq.s32.totalorder %s16, 0
      %p153 = por %p151, %p152
      %p154 = scmp.ne.s32.totalorder %s140, %s141
      %p155 = scmp.eq.s32.totalorder %s17, 1
      %p156 = por %p154, %p155
      %p158 = scmp.ne.s32.totalorder %s141, %s157
      %p159 = scmp.eq.s32.totalorder %s17, 0
      %p160 = por %p158, %p159
      %p161 = scmp.le.s32.totalorder 1, %s11
      %p162 = scmp.lt.s32.totalorder %s11, 3
      %p163 = pnand %p161, %p162
      %p164 = pneg %p163
      // Predicated region
      $region9: #{tpu_custom_call.1} parent=5 // pred_check
        _
      $region10: #{tpu_custom_call.1} parent=5 // pred_check_branch
        %166 = sbr.rel (%p163) target = $region12
      $region11: #{tpu_custom_call.1} parent=5 // pred_region
        %s167 = ssub.s32 %s11, 1
        // Predicated region
        $region13: #{tpu_custom_call.1} parent=11 // pred_check
          %p168 = pneg %p49
        $region14: #{tpu_custom_call.1} parent=11 // pred_check_branch
          %170 = sbr.rel (%p168) target = $region16
        $region15: #{tpu_custom_call.1} parent=11 // pred_region
          %s171 = smul.u32 2, %s20
          %p172 = scmp.lt.s32.totalorder %s171, 1
          %s173 = scalar_select %p172, %s171, 1
          %s174 = smul.addr %s173, 8
          %s175 = scalar_lea.vmem %s0, %s174
          %s176 = smul.u32 2, %s20
        $region16: #{tpu_custom_call.1} parent=11 // pred_fallthru
          _
      $region12: #{tpu_custom_call.1} parent=5 // pred_fallthru
        _
      %p177 = scmp.lt.s32.totalorder %s11, 2
      // Predicated region
      $region17: #{tpu_custom_call.1} parent=5 // pred_check
        %p178 = pneg %p177
      $region18: #{tpu_custom_call.1} parent=5 // pred_check_branch
        %180 = sbr.rel (%p178) target = $region20
      $region19: #{tpu_custom_call.1} parent=5 // pred_region
        // Predicated region
        $region21: #{tpu_custom_call.1} parent=19 // pred_check
          %p181 = pneg %p69
        $region22: #{tpu_custom_call.1} parent=19 // pred_check_branch
          %183 = sbr.rel (%p181) target = $region24
        $region23: #{tpu_custom_call.1} parent=19 // pred_region
          %s184 = sand.u32 %s59, 1
          %s185 = sand.u32 %s59, 1
          %s186 = smul.addr %s185, 32
          %s187 = scalar_lea.vmem [#allocation3], %s186
          %s188 = smul.addr %s19, 8
          %s189 = scalar_lea.vmem %s1, %s188
          // Predicated region
          $region25: #{tpu_custom_call.1} parent=23 // pred_check
            _
          $region26: #{tpu_custom_call.1} parent=23 // pred_check_branch
            %191 = sbr.rel (0) target = $region28
          $region27: #{tpu_custom_call.1} parent=23 // pred_region
            // Predicated region
            $region29: #{tpu_custom_call.1} parent=27 // pred_check
              _
            $region30: #{tpu_custom_call.1} parent=27 // pred_check_branch
              %193 = sbr.rel (0) target = $region32
            $region31: #{tpu_custom_call.1} parent=27 // pred_region
              // Predicated region
              $region44: #{tpu_custom_call.1} parent=31 // pred_check
                _
              $region45: #{tpu_custom_call.1} parent=31 // pred_check_branch
                %214 = sbr.rel (0) target = $region47
              $region46: #{tpu_custom_call.1} parent=31 // pred_region
                loop: start=0, step=1, limit=1
                $region48: #{tpu_custom_call.1} parent=46 // loop_pre_header
                  _
                $region49: #{tpu_custom_call.1} parent=46 // loop_header
                  %s216 = sphi 0, %s220
                  %p217 = scmp.ge.s32.totalorder %s216, 1
                  %s221 = sphi %s189, %s189
                  %s222 = sphi %s187, %s187
                $region50: #{tpu_custom_call.1} parent=46 // loop_header_branch
                  %219 = sbr.rel (%p217) target = $region54
                $region51: #{tpu_custom_call.1} parent=46 // loop_body
                  %v223 = vld [vmem:[%s221] sm:$0xff]
                  %224 = vst [vmem:[%s222] sm:$0xff] %v223
                  %v225 = vld [vmem:[%s221 + $0x10] sm:$0xff]
                  %226 = vst [vmem:[%s222 + $0x8] sm:$0xff] %v225
                  %v227 = vld [vmem:[%s221 + $0x20] sm:$0xff]
                  %228 = vst [vmem:[%s222 + $0x10] sm:$0xff] %v227
                  %v229 = vld [vmem:[%s221 + $0x30] sm:$0xff]
                  %230 = vst [vmem:[%s222 + $0x18] sm:$0xff] %v229
                $region52: #{tpu_custom_call.1} parent=46 // loop_footer
                  %s220 = sadd.s32 1, %s216
                $region53: #{tpu_custom_call.1} parent=46 // loop_footer_branch
                  %215 = sbr.rel target = $region49
                $region54: #{tpu_custom_call.1} parent=46 // loop_exit
                  _
              $region47: #{tpu_custom_call.1} parent=31 // pred_fallthru
                _
              // Predicated region
              $region55: #{tpu_custom_call.1} parent=31 // pred_check
                _
              $region56: #{tpu_custom_call.1} parent=31 // pred_check_branch
                %232 = sbr.rel target = $region58
              $region57: #{tpu_custom_call.1} parent=31 // pred_region
                _
              $region58: #{tpu_custom_call.1} parent=31 // pred_fallthru
                _
            $region32: #{tpu_custom_call.1} parent=27 // pred_fallthru
              _
            // Predicated region
            $region33: #{tpu_custom_call.1} parent=27 // pred_check
              _
            $region34: #{tpu_custom_call.1} parent=27 // pred_check_branch
              %195 = sbr.rel target = $region36
            $region35: #{tpu_custom_call.1} parent=27 // pred_region
              loop: start=0, step=1, limit=1
              $region37: #{tpu_custom_call.1} parent=35 // loop_pre_header
                _
              $region38: #{tpu_custom_call.1} parent=35 // loop_header
                %s198 = sphi 0, %s202
                %p199 = scmp.ge.s32.totalorder %s198, 1
                %s203 = sphi %s189, %s189
                %s204 = sphi %s187, %s187
              $region39: #{tpu_custom_call.1} parent=35 // loop_header_branch
                %201 = sbr.rel (%p199) target = $region43
              $region40: #{tpu_custom_call.1} parent=35 // loop_body
                %v205 = vld [vmem:[%s203] sm:$0xff]
                %206 = vst [vmem:[%s204] sm:$0xff] %v205
                %v207 = vld [vmem:[%s203 + $0x10] sm:$0xff]
                %208 = vst [vmem:[%s204 + $0x8] sm:$0xff] %v207
                %v209 = vld [vmem:[%s203 + $0x20] sm:$0xff]
                %210 = vst [vmem:[%s204 + $0x10] sm:$0xff] %v209
                %v211 = vld [vmem:[%s203 + $0x30] sm:$0xff]
                %212 = vst [vmem:[%s204 + $0x18] sm:$0xff] %v211
              $region41: #{tpu_custom_call.1} parent=35 // loop_footer
                %s202 = sadd.s32 1, %s198
              $region42: #{tpu_custom_call.1} parent=35 // loop_footer_branch
                %197 = sbr.rel target = $region38
              $region43: #{tpu_custom_call.1} parent=35 // loop_exit
                _
            $region36: #{tpu_custom_call.1} parent=27 // pred_fallthru
              _
          $region28: #{tpu_custom_call.1} parent=23 // pred_fallthru
            _
          %233 = vnop
        $region24: #{tpu_custom_call.1} parent=19 // pred_fallthru
          _
        // Predicated region
        $region59: #{tpu_custom_call.1} parent=19 // pred_check
          %p234 = pneg %p95
        $region60: #{tpu_custom_call.1} parent=19 // pred_check_branch
          %236 = sbr.rel (%p234) target = $region62
        $region61: #{tpu_custom_call.1} parent=19 // pred_region
          %s237 = sand.u32 %s85, 1
          %s238 = sand.u32 %s85, 1
          %s239 = smul.addr %s238, 32
          %s240 = scalar_lea.vmem [#allocation4], %s239
          %s241 = smul.addr %s19, 8
          %s242 = scalar_lea.vmem %s2, %s241
          // Predicated region
          $region63: #{tpu_custom_call.1} parent=61 // pred_check
            _
          $region64: #{tpu_custom_call.1} parent=61 // pred_check_branch
            %244 = sbr.rel (0) target = $region66
          $region65: #{tpu_custom_call.1} parent=61 // pred_region
            // Predicated region
            $region67: #{tpu_custom_call.1} parent=65 // pred_check
              _
            $region68: #{tpu_custom_call.1} parent=65 // pred_check_branch
              %246 = sbr.rel (0) target = $region70
            $region69: #{tpu_custom_call.1} parent=65 // pred_region
              // Predicated region
              $region82: #{tpu_custom_call.1} parent=69 // pred_check
                _
              $region83: #{tpu_custom_call.1} parent=69 // pred_check_branch
                %267 = sbr.rel (0) target = $region85
              $region84: #{tpu_custom_call.1} parent=69 // pred_region
                loop: start=0, step=1, limit=1
                $region86: #{tpu_custom_call.1} parent=84 // loop_pre_header
                  _
                $region87: #{tpu_custom_call.1} parent=84 // loop_header
                  %s269 = sphi 0, %s273
                  %p270 = scmp.ge.s32.totalorder %s269, 1
                  %s274 = sphi %s242, %s242
                  %s275 = sphi %s240, %s240
                $region88: #{tpu_custom_call.1} parent=84 // loop_header_branch
                  %272 = sbr.rel (%p270) target = $region92
                $region89: #{tpu_custom_call.1} parent=84 // loop_body
                  %v276 = vld [vmem:[%s274] sm:$0xff]
                  %277 = vst [vmem:[%s275] sm:$0xff] %v276
                  %v278 = vld [vmem:[%s274 + $0x10] sm:$0xff]
                  %279 = vst [vmem:[%s275 + $0x8] sm:$0xff] %v278
                  %v280 = vld [vmem:[%s274 + $0x20] sm:$0xff]
                  %281 = vst [vmem:[%s275 + $0x10] sm:$0xff] %v280
                  %v282 = vld [vmem:[%s274 + $0x30] sm:$0xff]
                  %283 = vst [vmem:[%s275 + $0x18] sm:$0xff] %v282
                $region90: #{tpu_custom_call.1} parent=84 // loop_footer
                  %s273 = sadd.s32 1, %s269
                $region91: #{tpu_custom_call.1} parent=84 // loop_footer_branch
                  %268 = sbr.rel target = $region87
                $region92: #{tpu_custom_call.1} parent=84 // loop_exit
                  _
              $region85: #{tpu_custom_call.1} parent=69 // pred_fallthru
                _
              // Predicated region
              $region93: #{tpu_custom_call.1} parent=69 // pred_check
                _
              $region94: #{tpu_custom_call.1} parent=69 // pred_check_branch
                %285 = sbr.rel target = $region96
              $region95: #{tpu_custom_call.1} parent=69 // pred_region
                _
              $region96: #{tpu_custom_call.1} parent=69 // pred_fallthru
                _
            $region70: #{tpu_custom_call.1} parent=65 // pred_fallthru
              _
            // Predicated region
            $region71: #{tpu_custom_call.1} parent=65 // pred_check
              _
            $region72: #{tpu_custom_call.1} parent=65 // pred_check_branch
              %248 = sbr.rel target = $region74
            $region73: #{tpu_custom_call.1} parent=65 // pred_region
              loop: start=0, step=1, limit=1
              $region75: #{tpu_custom_call.1} parent=73 // loop_pre_header
                _
              $region76: #{tpu_custom_call.1} parent=73 // loop_header
                %s251 = sphi 0, %s255
                %p252 = scmp.ge.s32.totalorder %s251, 1
                %s256 = sphi %s242, %s242
                %s257 = sphi %s240, %s240
              $region77: #{tpu_custom_call.1} parent=73 // loop_header_branch
                %254 = sbr.rel (%p252) target = $region81
              $region78: #{tpu_custom_call.1} parent=73 // loop_body
                %v258 = vld [vmem:[%s256] sm:$0xff]
                %259 = vst [vmem:[%s257] sm:$0xff] %v258
                %v260 = vld [vmem:[%s256 + $0x10] sm:$0xff]
                %261 = vst [vmem:[%s257 + $0x8] sm:$0xff] %v260
                %v262 = vld [vmem:[%s256 + $0x20] sm:$0xff]
                %263 = vst [vmem:[%s257 + $0x10] sm:$0xff] %v262
                %v264 = vld [vmem:[%s256 + $0x30] sm:$0xff]
                %265 = vst [vmem:[%s257 + $0x18] sm:$0xff] %v264
              $region79: #{tpu_custom_call.1} parent=73 // loop_footer
                %s255 = sadd.s32 1, %s251
              $region80: #{tpu_custom_call.1} parent=73 // loop_footer_branch
                %250 = sbr.rel target = $region76
              $region81: #{tpu_custom_call.1} parent=73 // loop_exit
                _
            $region74: #{tpu_custom_call.1} parent=65 // pred_fallthru
              _
          $region66: #{tpu_custom_call.1} parent=61 // pred_fallthru
            _
          %286 = vnop
        $region62: #{tpu_custom_call.1} parent=19 // pred_fallthru
          _
        // Predicated region
        $region97: #{tpu_custom_call.1} parent=19 // pred_check
          %p287 = pneg %p121
        $region98: #{tpu_custom_call.1} parent=19 // pred_check_branch
          %289 = sbr.rel (%p287) target = $region100
        $region99: #{tpu_custom_call.1} parent=19 // pred_region
          %s290 = smul.u32 16, %s19
          %p291 = scmp.lt.s32.totalorder %s290, 31
          %s292 = scalar_select %p291, %s290, 31
          %s293 = smul.addr %s292, 8
          %s294 = scalar_lea.vmem %s3, %s293
          %s295 = smul.u32 16, %s19
        $region100: #{tpu_custom_call.1} parent=19 // pred_fallthru
          _
      $region20: #{tpu_custom_call.1} parent=5 // pred_fallthru
        _
      %p296 = scmp.le.s32.totalorder 1, %s11
      %p297 = scmp.lt.s32.totalorder %s11, 3
      %p298 = pnand %p296, %p297
      %p299 = pneg %p298
      // Predicated region
      $region101: #{tpu_custom_call.1} parent=5 // pred_check
        _
      $region102: #{tpu_custom_call.1} parent=5 // pred_check_branch
        %301 = sbr.rel (%p298) target = $region104
      $region103: #{tpu_custom_call.1} parent=5 // pred_region
        %s302 = ssub.s32 %s11, 1
        %s303 = sand.u32 %s62, 1
        %s304 = sand.u32 %s62, 1
        %s305 = smul.addr %s304, 32
        %s306 = scalar_lea.vmem [#allocation3], %s305
        // Predicated region
        $region105: #{tpu_custom_call.1} parent=103 // pred_check
          %p307 = pneg %p75
        $region106: #{tpu_custom_call.1} parent=103 // pred_check_branch
          %309 = sbr.rel (%p307) target = $region108
        $region107: #{tpu_custom_call.1} parent=103 // pred_region
          _
        $region108: #{tpu_custom_call.1} parent=103 // pred_fallthru
          _
        %s310 = sand.u32 %s88, 1
        %s311 = sand.u32 %s88, 1
        %s312 = smul.addr %s311, 32
        %s313 = scalar_lea.vmem [#allocation4], %s312
        // Predicated region
        $region109: #{tpu_custom_call.1} parent=103 // pred_check
          %p314 = pneg %p101
        $region110: #{tpu_custom_call.1} parent=103 // pred_check_branch
          %316 = sbr.rel (%p314) target = $region112
        $region111: #{tpu_custom_call.1} parent=103 // pred_region
          _
        $region112: #{tpu_custom_call.1} parent=103 // pred_fallthru
          _
        %s317 = smul.u32 2, %s20
        %p318 = scmp.lt.s32.totalorder %s317, 1
        %s319 = scalar_select %p318, %s317, 1
        %s320 = smul.addr %s319, 8
        %s321 = scalar_lea.vmem %s0, %s320
        %p322 = pneg %p49
        %p323 = pneg %p46
        %s324 = sand.u32 %s62, 1
        %s325 = sand.u32 %s62, 1
        %s326 = smul.addr %s325, 32
        %s327 = scalar_lea.vmem [#allocation3], %s326
        %p328 = pneg %p75
        %p329 = pneg %p72
        %s330 = sand.u32 %s88, 1
        %s331 = sand.u32 %s88, 1
        %s332 = smul.addr %s331, 32
        %s333 = scalar_lea.vmem [#allocation4], %s332
        %p334 = pneg %p101
        %p335 = pneg %p98
        %s336 = smul.u32 16, %s21
        %p337 = scmp.lt.s32.totalorder %s336, 31
        %s338 = scalar_select %p337, %s336, 31
        %s339 = smul.addr %s338, 8
        %s340 = scalar_lea.vmem %s3, %s339
        %p341 = pneg %p127
        %p342 = pneg %p124
        %p343 = pneg %p153
        %p344 = pneg %p150
        %s345 = smul.u32 2, %s20
        %p346 = scmp.lt.s32.totalorder %s345, 1
        %s347 = scalar_select %p346, %s345, 1
        %s348 = smul.addr %s347, 8
        %s349 = scalar_lea.vmem %s0, %s348
        %s350 = smul.u32 2, %s20
        %s351 = smul.u32 16, %s21
        %p352 = scmp.lt.s32.totalorder %s351, 31
        %s353 = scalar_select %p352, %s351, 31
        %s354 = smul.addr %s353, 8
        %s355 = scalar_lea.vmem %s3, %s354
        %s356 = smul.u32 16, %s21
        %s357 = smul.u32 2, %s20
        %p358 = scmp.eq.s32.totalorder %s21, 0
        // Predicated region
        $region113: #{tpu_custom_call.1} parent=103 // pred_check
          %p359 = pneg %p358
        $region114: #{tpu_custom_call.1} parent=103 // pred_check_branch
          %361 = sbr.rel (%p359) target = $region116
        $region115: #{tpu_custom_call.1} parent=103 // pred_region
          %vm362 = vcmask 261120
          %363 = vst.msk [vmem:[#allocation2] sm:$0xff] %vm362, 0.0
          %364 = vst.msk [vmem:[#allocation2 + $0x8] sm:$0xff] %vm362, 0.0
        $region116: #{tpu_custom_call.1} parent=103 // pred_fallthru
          _
        %v365 = vld [vmem:[%s349] sm:$0xff]
        %v366 = vld [vmem:[%s349 + $0x8] sm:$0xff]
        %v367 = vld [vmem:[%s306] sm:$0xff]
        %v368 = vld [vmem:[%s306 + $0x8] sm:$0xff]
        %v369 = vld [vmem:[%s306 + $0x10] sm:$0xff]
        %v370 = vld [vmem:[%s306 + $0x18] sm:$0xff]
        %vm371 = vcmask 261120
        %v373 = vsel %vm371, %v365, 0
        %v376 = vsel %vm371, %v366, 0
        %378 = vmatprep.subr.mxu0 0.0
        %379 = vmatpush1.msra.mxu0 %v367
        %380 = vmatprep.subr.mxu0 0.0
        %381 = vmatpush1.msra.mxu0 %v368
        %382 = vmatprep.subr.mxu0 0.0
        %383 = vmatpush1.msra.mxu0 %v369
        %384 = vmatprep.subr.mxu0 0.0
        %385 = vmatpush1.msra.mxu0 %v370
        %386 = vmatprep.subr.mxu0 0.0
        %387 = vmatpush1.msra.mxu0 0.0
        %388 = vmatprep.subr.mxu0 0.0
        %389 = vmatpush1.msra.mxu0 0.0
        %390 = vmatprep.subr.mxu0 0.0
        %391 = vmatpush1.msra.mxu0 0.0
        %392 = vmatprep.subr.mxu0 0.0
        %393 = vmatpush1.msra.mxu0 0.0
        %394 = vmatprep.subr.mxu0 0.0
        %395 = vmatpush1.msra.mxu0 0.0
        %396 = vmatprep.subr.mxu0 0.0
        %397 = vmatpush1.msra.mxu0 0.0
        %398 = vmatprep.subr.mxu0 0.0
        %399 = vmatpush1.msra.mxu0 0.0
        %400 = vmatprep.subr.mxu0 0.0
        %401 = vmatpush1.msra.mxu0 0.0
        %402 = vmatprep.subr.mxu0 0.0
        %403 = vmatpush1.msra.mxu0 0.0
        %404 = vmatprep.subr.mxu0 0.0
        %405 = vmatpush1.msra.mxu0 0.0
        %406 = vmatprep.subr.mxu0 0.0
        %407 = vmatpush1.msra.mxu0 0.0
        %408 = vmatprep.subr.mxu0 0.0
        %409 = vmatpush1.msra.mxu0 0.0
        %410 = vmatprep.subr.mxu0 0.0
        %411 = vmatpush1.msra.mxu0 0.0
        %412 = vmatprep.subr.mxu0 0.0
        %413 = vmatpush1.msra.mxu0 0.0
        %414 = vmatprep.subr.mxu0 0.0
        %415 = vmatpush1.msra.mxu0 0.0
        %416 = vmatprep.subr.mxu0 0.0
        %417 = vmatpush1.msra.mxu0 0.0
        %418 = vmatprep.subr.mxu0 0.0
        %419 = vmatpush1.msra.mxu0 0.0
        %420 = vmatprep.subr.mxu0 0.0
        %421 = vmatpush1.msra.mxu0 0.0
        %422 = vmatprep.subr.mxu0 0.0
        %423 = vmatpush1.msra.mxu0 0.0
        %424 = vmatprep.subr.mxu0 0.0
        %425 = vmatpush1.msra.mxu0 0.0
        %426 = vmatprep.subr.mxu0 0.0
        %427 = vmatpush1.msra.mxu0 0.0
        %428 = vmatprep.subr.mxu0 0.0
        %429 = vmatpush1.msra.mxu0 0.0
        %430 = vmatprep.subr.mxu0 0.0
        %431 = vmatpush1.msra.mxu0 0.0
        %432 = vmatprep.subr.mxu0 0.0
        %433 = vmatpush1.msra.mxu0 0.0
        %434 = vmatprep.subr.mxu0 0.0
        %435 = vmatpush1.msra.mxu0 0.0
        %436 = vmatprep.subr.mxu0 0.0
        %437 = vmatpush1.msra.mxu0 0.0
        %438 = vmatprep.subr.mxu0 0.0
        %439 = vmatpush1.msra.mxu0 0.0
        %440 = vmatprep.subr.mxu0 0.0
        %441 = vmatpush1.msra.mxu0 0.0
        %442 = vmatprep.mubr.f32.mxu0 0.0
        %443 = vmatmul.mubr.f32.gmra.mrb[0].mxu0 %v373
        %v444 = vpop.f32.mrb[0].mxu0
        %v445 = vadd.f32 0.0, %v444
        %v446 = vpop.f32.mrb[0].mxu0
        %447 = vmatprep.mubr.f32.mxu0 0.0
        %448 = vmatmul.mubr.f32.gmra.mrb[0].mxu0 %v376
        %v449 = vpop.f32.mrb[0].mxu0
        %v450 = vadd.f32 0.0, %v449
        %v451 = vpop.f32.mrb[0].mxu0
        %452 = vdwg.mxu0
        %v453 = vld [vmem:[%s313] sm:$0xff]
        %v454 = vld [vmem:[%s313 + $0x8] sm:$0xff]
        %v455 = vld [vmem:[%s313 + $0x10] sm:$0xff]
        %v456 = vld [vmem:[%s313 + $0x18] sm:$0xff]
        %457 = vmatprep.subr.mxu0 0.0
        %458 = vmatpush1.msra.mxu0 %v453
        %459 = vmatprep.subr.mxu0 0.0
        %460 = vmatpush1.msra.mxu0 %v454
        %461 = vmatprep.subr.mxu0 0.0
        %462 = vmatpush1.msra.mxu0 %v455
        %463 = vmatprep.subr.mxu0 0.0
        %464 = vmatpush1.msra.mxu0 %v456
        %465 = vmatprep.subr.mxu0 0.0
        %466 = vmatpush1.msra.mxu0 0.0
        %467 = vmatprep.subr.mxu0 0.0
        %468 = vmatpush1.msra.mxu0 0.0
        %469 = vmatprep.subr.mxu0 0.0
        %470 = vmatpush1.msra.mxu0 0.0
        %471 = vmatprep.subr.mxu0 0.0
        %472 = vmatpush1.msra.mxu0 0.0
        %473 = vmatprep.subr.mxu0 0.0
        %474 = vmatpush1.msra.mxu0 0.0
        %475 = vmatprep.subr.mxu0 0.0
        %476 = vmatpush1.msra.mxu0 0.0
        %477 = vmatprep.subr.mxu0 0.0
        %478 = vmatpush1.msra.mxu0 0.0
        %479 = vmatprep.subr.mxu0 0.0
        %480 = vmatpush1.msra.mxu0 0.0
        %481 = vmatprep.subr.mxu0 0.0
        %482 = vmatpush1.msra.mxu0 0.0
        %483 = vmatprep.subr.mxu0 0.0
        %484 = vmatpush1.msra.mxu0 0.0
        %485 = vmatprep.subr.mxu0 0.0
        %486 = vmatpush1.msra.mxu0 0.0
        %487 = vmatprep.subr.mxu0 0.0
        %488 = vmatpush1.msra.mxu0 0.0
        %489 = vmatprep.subr.mxu0 0.0
        %490 = vmatpush1.msra.mxu0 0.0
        %491 = vmatprep.subr.mxu0 0.0
        %492 = vmatpush1.msra.mxu0 0.0
        %493 = vmatprep.subr.mxu0 0.0
        %494 = vmatpush1.msra.mxu0 0.0
        %495 = vmatprep.subr.mxu0 0.0
        %496 = vmatpush1.msra.mxu0 0.0
        %497 = vmatprep.subr.mxu0 0.0
        %498 = vmatpush1.msra.mxu0 0.0
        %499 = vmatprep.subr.mxu0 0.0
        %500 = vmatpush1.msra.mxu0 0.0
        %501 = vmatprep.subr.mxu0 0.0
        %502 = vmatpush1.msra.mxu0 0.0
        %503 = vmatprep.subr.mxu0 0.0
        %504 = vmatpush1.msra.mxu0 0.0
        %505 = vmatprep.subr.mxu0 0.0
        %506 = vmatpush1.msra.mxu0 0.0
        %507 = vmatprep.subr.mxu0 0.0
        %508 = vmatpush1.msra.mxu0 0.0
        %509 = vmatprep.subr.mxu0 0.0
        %510 = vmatpush1.msra.mxu0 0.0
        %511 = vmatprep.subr.mxu0 0.0
        %512 = vmatpush1.msra.mxu0 0.0
        %513 = vmatprep.subr.mxu0 0.0
        %514 = vmatpush1.msra.mxu0 0.0
        %515 = vmatprep.subr.mxu0 0.0
        %516 = vmatpush1.msra.mxu0 0.0
        %517 = vmatprep.subr.mxu0 0.0
        %518 = vmatpush1.msra.mxu0 0.0
        %519 = vmatprep.subr.mxu0 0.0
        %520 = vmatpush1.msra.mxu0 0.0
        %521 = vmatprep.mubr.f32.mxu0 0.0
        %522 = vmatmul.mubr.f32.gmra.mrb[0].mxu0 %v373
        %v523 = vpop.f32.mrb[0].mxu0
        %v524 = vadd.f32 0.0, %v523
        %v525 = vpop.f32.mrb[0].mxu0
        %526 = vmatprep.mubr.f32.mxu0 0.0
        %527 = vmatmul.mubr.f32.gmra.mrb[0].mxu0 %v376
        %v528 = vpop.f32.mrb[0].mxu0
        %v529 = vadd.f32 0.0, %v528
        %v530 = vpop.f32.mrb[0].mxu0
        %531 = vdwg.mxu0
        %v532 = vxor.u32 %v445, 2147483648
        %v533 = vxor.u32 %v450, 2147483648
        %v534 = vmul.f32 %v532, 1.442695
        %v535 = vpow.pop %v534
        %v536 = vmul.f32 %v533, 1.442695
        %v537 = vpow.pop %v536
        %v538 = vadd.f32 %v535, 1.0
        %v539 = vadd.f32 %v537, 1.0
        %v540 = vrcp.pop %v538
        %v541 = vmul.f32 1.0, %v540
        %v542 = vrcp.pop %v539
        %v543 = vmul.f32 1.0, %v542
        %v544 = vmul.f32 %v445, %v541
        %v545 = vmul.f32 %v450, %v543
        %v546 = vmul.f32 %v544, %v524
        %v547 = vmul.f32 %v545, %v529
        %v548 = vld [vmem:[#allocation2] sm:$0xff]
        %v549 = vld [vmem:[#allocation2 + $0x8] sm:$0xff]
        %v550 = vld [vmem:[%s355] sm:$0xff]
        %v551 = vld [vmem:[%s355 + $0x8] sm:$0xff]
        %v552 = vld [vmem:[%s355 + $0x10] sm:$0xff]
        %v553 = vld [vmem:[%s355 + $0x18] sm:$0xff]
        %v554 = vld [vmem:[%s355 + $0x20] sm:$0xff]
        %v555 = vld [vmem:[%s355 + $0x28] sm:$0xff]
        %v556 = vld [vmem:[%s355 + $0x30] sm:$0xff]
        %v557 = vld [vmem:[%s355 + $0x38] sm:$0xff]
        %v558 = vld [vmem:[%s355 + $0x40] sm:$0xff]
        %v559 = vld [vmem:[%s355 + $0x48] sm:$0xff]
        %v560 = vld [vmem:[%s355 + $0x50] sm:$0xff]
        %v561 = vld [vmem:[%s355 + $0x58] sm:$0xff]
        %v562 = vld [vmem:[%s355 + $0x60] sm:$0xff]
        %v563 = vld [vmem:[%s355 + $0x68] sm:$0xff]
        %v564 = vld [vmem:[%s355 + $0x70] sm:$0xff]
        %v565 = vld [vmem:[%s355 + $0x78] sm:$0xff]
        %566 = vmatprep.subr.mxu0 0.0
        %567 = vmatpush1.msra.mxu0 %v550
        %568 = vmatprep.subr.mxu0 0.0
        %569 = vmatpush1.msra.mxu0 %v551
        %570 = vmatprep.subr.mxu0 0.0
        %571 = vmatpush1.msra.mxu0 %v552
        %572 = vmatprep.subr.mxu0 0.0
        %573 = vmatpush1.msra.mxu0 %v553
        %574 = vmatprep.subr.mxu0 0.0
        %575 = vmatpush1.msra.mxu0 %v554
        %576 = vmatprep.subr.mxu0 0.0
        %577 = vmatpush1.msra.mxu0 %v555
        %578 = vmatprep.subr.mxu0 0.0
        %579 = vmatpush1.msra.mxu0 %v556
        %580 = vmatprep.subr.mxu0 0.0
        %581 = vmatpush1.msra.mxu0 %v557
        %582 = vmatprep.subr.mxu0 0.0
        %583 = vmatpush1.msra.mxu0 %v558
        %584 = vmatprep.subr.mxu0 0.0
        %585 = vmatpush1.msra.mxu0 %v559
        %586 = vmatprep.subr.mxu0 0.0
        %587 = vmatpush1.msra.mxu0 %v560
        %588 = vmatprep.subr.mxu0 0.0
        %589 = vmatpush1.msra.mxu0 %v561
        %590 = vmatprep.subr.mxu0 0.0
        %591 = vmatpush1.msra.mxu0 %v562
        %592 = vmatprep.subr.mxu0 0.0
        %593 = vmatpush1.msra.mxu0 %v563
        %594 = vmatprep.subr.mxu0 0.0
        %595 = vmatpush1.msra.mxu0 %v564
        %596 = vmatprep.subr.mxu0 0.0
        %597 = vmatpush1.msra.mxu0 %v565
        %598 = vmatprep.subr.mxu0 0.0
        %599 = vmatpush1.msra.mxu0 0.0
        %600 = vmatprep.subr.mxu0 0.0
        %601 = vmatpush1.msra.mxu0 0.0
        %602 = vmatprep.subr.mxu0 0.0
        %603 = vmatpush1.msra.mxu0 0.0
        %604 = vmatprep.subr.mxu0 0.0
        %605 = vmatpush1.msra.mxu0 0.0
        %606 = vmatprep.subr.mxu0 0.0
        %607 = vmatpush1.msra.mxu0 0.0
        %608 = vmatprep.subr.mxu0 0.0
        %609 = vmatpush1.msra.mxu0 0.0
        %610 = vmatprep.subr.mxu0 0.0
        %611 = vmatpush1.msra.mxu0 0.0
        %612 = vmatprep.subr.mxu0 0.0
        %613 = vmatpush1.msra.mxu0 0.0
        %614 = vmatprep.subr.mxu0 0.0
        %615 = vmatpush1.msra.mxu0 0.0
        %616 = vmatprep.subr.mxu0 0.0
        %617 = vmatpush1.msra.mxu0 0.0
        %618 = vmatprep.subr.mxu0 0.0
        %619 = vmatpush1.msra.mxu0 0.0
        %620 = vmatprep.subr.mxu0 0.0
        %621 = vmatpush1.msra.mxu0 0.0
        %622 = vmatprep.subr.mxu0 0.0
        %623 = vmatpush1.msra.mxu0 0.0
        %624 = vmatprep.subr.mxu0 0.0
        %625 = vmatpush1.msra.mxu0 0.0
        %626 = vmatprep.subr.mxu0 0.0
        %627 = vmatpush1.msra.mxu0 0.0
        %628 = vmatprep.subr.mxu0 0.0
        %629 = vmatpush1.msra.mxu0 0.0
        %630 = vmatprep.mubr.f32.mxu0 0.0
        %631 = vmatmul.mubr.f32.gmra.mrb[0].mxu0 %v546
        %v632 = vpop.f32.mrb[0].mxu0
        %v633 = vadd.f32 0.0, %v632
        %v634 = vpop.f32.mrb[0].mxu0
        %635 = vmatprep.mubr.f32.mxu0 0.0
        %636 = vmatmul.mubr.f32.gmra.mrb[0].mxu0 %v547
        %v637 = vpop.f32.mrb[0].mxu0
        %v638 = vadd.f32 0.0, %v637
        %v639 = vpop.f32.mrb[0].mxu0
        %640 = vdwg.mxu0
        %v641 = vadd.f32 %v548, %v633
        %v642 = vadd.f32 %v549, %v638
        %643 = vst.msk [vmem:[#allocation2] sm:$0xff] %vm371, %v641
        %644 = vst.msk [vmem:[#allocation2 + $0x8] sm:$0xff] %vm371, %v642
        %p645 = scmp.eq.s32.totalorder %s21, 1
        // Predicated region
        $region117: #{tpu_custom_call.1} parent=103 // pred_check
          %p646 = pneg %p645
        $region118: #{tpu_custom_call.1} parent=103 // pred_check_branch
          %648 = sbr.rel (%p646) target = $region120
        $region119: #{tpu_custom_call.1} parent=103 // pred_region
          %v649 = vld [vmem:[#allocation2] sm:$0xff]
          %v650 = vld [vmem:[#allocation2 + $0x8] sm:$0xff]
          %651 = vst.msk [vmem:[#allocation5] sm:$0xff] %vm371, %v649
          %652 = vst.msk [vmem:[#allocation5 + $0x8] sm:$0xff] %vm371, %v650
        $region120: #{tpu_custom_call.1} parent=103 // pred_fallthru
          _
        // Predicated region
        $region121: #{tpu_custom_call.1} parent=103 // pred_check
          %p653 = pneg %p150
        $region122: #{tpu_custom_call.1} parent=103 // pred_check_branch
          %655 = sbr.rel (%p653) target = $region124
        $region123: #{tpu_custom_call.1} parent=103 // pred_region
          %s656 = smul.u32 2, %s20
          %s658 = ssub.s32 256, 256
          %659 = vsyncadd [#allocation6], %s658
          %s660 = smul.addr %s656, 128
          %s661 = scalar_lea.hbm %s4, %s660
          %s662 = sshll.u32 [#allocation5], 4
          %s663 = int_to_ptr.vmem [resolvable:$true] %s662
          %668 = dma.vmem_to_hbm [thread:$0]  %s663, 256, %s661, [#allocation6], 128, 128, 8
        $region124: #{tpu_custom_call.1} parent=103 // pred_fallthru
          _
        // Predicated region
        $region125: #{tpu_custom_call.1} parent=103 // pred_check
          %p669 = pneg %p150
        $region126: #{tpu_custom_call.1} parent=103 // pred_check_branch
          %671 = sbr.rel (%p669) target = $region128
        $region127: #{tpu_custom_call.1} parent=103 // pred_region
          %672 = dma.done [#allocation6], 256
        $region128: #{tpu_custom_call.1} parent=103 // pred_fallthru
          _
      $region104: #{tpu_custom_call.1} parent=5 // pred_fallthru
        _
      %p673 = scmp.le.s32.totalorder 2, %s11
      // Predicated region
      $region129: #{tpu_custom_call.1} parent=5 // pred_check
        %p674 = pneg %p673
      $region130: #{tpu_custom_call.1} parent=5 // pred_check_branch
        %676 = sbr.rel (%p674) target = $region132
      $region131: #{tpu_custom_call.1} parent=5 // pred_region
        %s677 = ssub.s32 %s11, 2
      $region132: #{tpu_custom_call.1} parent=5 // pred_fallthru
        _
    $region6: #{tpu_custom_call.1} parent=1 // loop_footer
      %s15 = sadd.s32 1, %s11
    $region7: #{tpu_custom_call.1} parent=1 // loop_footer_branch
      %10 = sbr.rel target = $region3
    $region8: #{tpu_custom_call.1} parent=1 // loop_exit
      _
    %678 = vsyncpa [#allocation6], 1
    %s679 = scalar_lea.sflag [#allocation6], 1
    %680 = vsyncpa %s679, 1

</llo_original>
